<compile_context>
chip_gen: v5e
topology: v5e:2x2
jax: 0.10.0
libtpu: 0.0.40
codegen_flags: <defaults>
</compile_context>

<pallas_src>
import functools

import jax
import jax.numpy as jnp
from jax.experimental import pallas as pl
from jax.experimental.pallas import tpu as pltpu

LANE = 128
SUBLANE = 8


def _round_up(n, m):
    return ((n + m - 1) // m) * m


# ---------------------------------------------------------------------------
# Kernel: three bias-folded Linear layers, ReLU / ReLU / max_action * tanh.
# Operands are bf16 (MXU), accumulation and all elementwise math stay f32
# (v5e has no bf16 VPU/EUP path).  tanh runs on the EUP.
# ---------------------------------------------------------------------------
def actor_kernel(x_ref, w1_ref, w2_ref, w3_ref, out_ref, *, max_action):
    x = x_ref[...]                                           # (Bp, Sp) bf16, col S == 1
    h1 = jnp.dot(x, w1_ref[...], preferred_element_type=jnp.float32)
    h1 = jnp.maximum(h1, 0.0)                                # carry-1 col survives ReLU
    h2 = jnp.dot(h1.astype(jnp.bfloat16), w2_ref[...],
                 preferred_element_type=jnp.float32)
    h2 = jnp.maximum(h2, 0.0)
    h3 = jnp.dot(h2.astype(jnp.bfloat16), w3_ref[...],
                 preferred_element_type=jnp.float32)
    out_ref[...] = max_action * jnp.tanh(h3)                 # lane-dense (Bp, Ap) f32


# ---------------------------------------------------------------------------
# Parameter prep: pad to (8,128)-aligned tiles, fold biases into the weights
# (ones-carry column), store weights in bf16.
# ---------------------------------------------------------------------------
def prepare_actor_params(params):
    w1, b1, w2, b2, w3, b3 = params
    S, H1 = w1.shape
    H2 = w2.shape[1]
    A = w3.shape[1]
    # +1 on the contracted dims guarantees room for the bias / ones-carry row.
    Sp = _round_up(S + 1, LANE)
    H1p = _round_up(H1 + 1, LANE)
    H2p = _round_up(H2 + 1, LANE)
    Ap = _round_up(A, LANE)

    w1p = jnp.zeros((Sp, H1p), jnp.float32)
    w1p = (w1p.at[:S, :H1].set(w1)
               .at[S, :H1].set(b1.reshape(-1))   # bias row, hit by x[:, S] == 1
               .at[S, H1].set(1.0))              # propagate the 1 to h1[:, H1]
    w2p = jnp.zeros((H1p, H2p), jnp.float32)
    w2p = (w2p.at[:H1, :H2].set(w2)
               .at[H1, :H2].set(b2.reshape(-1))
               .at[H1, H2].set(1.0))
    w3p = jnp.zeros((H2p, Ap), jnp.float32)
    w3p = (w3p.at[:H2, :A].set(w3)
               .at[H2, :A].set(b3.reshape(-1)))

    w1p = w1p.astype(jnp.bfloat16)
    w2p = w2p.astype(jnp.bfloat16)
    w3p = w3p.astype(jnp.bfloat16)

    dims = dict(S=S, H1=H1, H2=H2, A=A, Sp=Sp, H1p=H1p, H2p=H2p, Ap=Ap)
    return (w1p, w2p, w3p), dims


def prepare_actor_input(x, dims):
    """Pad a raw (B, S) f32 batch to the (Bp, Sp) bf16 slab the kernel expects.

    In a rollout loop this belongs inside the caller's jitted step (or the
    observation buffer should be produced directly in this layout) so it does
    not add per-call dispatch overhead.
    """
    B, S = x.shape
    assert S == dims["S"]
    Bp = _round_up(max(B, SUBLANE), SUBLANE)
    Sp = dims["Sp"]
    xp = jnp.zeros((Bp, Sp), jnp.bfloat16)
    xp = xp.at[:B, :S].set(x.astype(jnp.bfloat16))
    xp = xp.at[:, S].set(1.0)                    # ones-carry column for bias fold
    return xp


# ---------------------------------------------------------------------------
# Wrappers
# ---------------------------------------------------------------------------
def actor_forward_padded(xp, prepared, dims, *, max_action=1.0):
    """Minimal per-call path: pallas_call on an already-padded bf16 batch."""
    w1p, w2p, w3p = prepared
    Bp, Sp = xp.shape
    H1p, H2p, Ap = dims["H1p"], dims["H2p"], dims["Ap"]

    # Padded executed work (advisory scheduling hint only).
    flops = 2 * Bp * (Sp * H1p + H1p * H2p + H2p * Ap)
    bytes_accessed = (int(xp.size) * 2 + int(w1p.size) * 2 + int(w2p.size) * 2
                      + int(w3p.size) * 2 + Bp * Ap * 4)

    kernel = functools.partial(actor_kernel, max_action=max_action)
    # Grid-less call: ~0.6 MB of bf16 weights + tiny activations fit trivially
    # in VMEM on v5e/v6e/v7x.  If batch grows (vectorized envs), add a grid
    # over batch with dimension_semantics=("parallel",) and give the weight
    # BlockSpecs index_maps that always return (0, 0) so weights stay
    # VMEM-resident across grid steps.
    return pl.pallas_call(
        kernel,
        out_shape=jax.ShapeDtypeStruct((Bp, Ap), jnp.float32),
        in_specs=[pl.BlockSpec(memory_space=pltpu.VMEM)] * 4,
        out_specs=pl.BlockSpec(memory_space=pltpu.VMEM),
        cost_estimate=pl.CostEstimate(flops=int(flops),
                                      transcendentals=int(Bp * Ap),
                                      bytes_accessed=int(bytes_accessed)),
    )(xp, w1p, w2p, w3p)


def actor_forward(x, prepared, dims, *, max_action=1.0):
    """Convenience wrapper: raw (B, S) f32 in, (B, A) f32 out."""
    B = x.shape[0]
    xp = prepare_actor_input(x, dims)
    out_padded = actor_forward_padded(xp, prepared, dims, max_action=max_action)
    return out_padded[:B, :dims["A"]]


# ---------------------------------------------------------------------------
# Init + references
# ---------------------------------------------------------------------------
def init_actor_params(key, state_dim, action_dim):
    """Deterministic init mimicking PyTorch nn.Linear default U[-1/sqrt(fan_in), +]."""
    def linear(key, fan_in, fan_out):
        kw, kb = jax.random.split(key)
        bound = 1.0 / jnp.sqrt(jnp.float32(fan_in))
        # stored as (in, out) — torch weight (out, in) transposed
        w = jax.random.uniform(kw, (fan_in, fan_out), jnp.float32, -bound, bound)
        b = jax.random.uniform(kb, (1, fan_out), jnp.float32, -bound, bound)
        return w, b

    k1, k2, k3 = jax.random.split(key, 3)
    w1, b1 = linear(k1, state_dim, 400)
    w2, b2 = linear(k2, 400, 300)
    w3, b3 = linear(k3, 300, action_dim)
    return (w1, b1, w2, b2, w3, b3)


def actor_forward_ref_bf16(x, params, *, max_action=1.0):
    """Pure-JAX reference matching the kernel's bf16 operand path
    (bf16 x/weights/biases, f32 accumulation and elementwise math)."""
    w1, b1, w2, b2, w3, b3 = params

    def lin(h, w, b):
        acc = jnp.dot(h.astype(jnp.bfloat16), w.astype(jnp.bfloat16),
                      preferred_element_type=jnp.float32)
        return acc + b.astype(jnp.bfloat16).astype(jnp.float32)

    h1 = jnp.maximum(lin(x, w1, b1), 0.0)
    h2 = jnp.maximum(lin(h1, w2, b2), 0.0)
    return max_action * jnp.tanh(lin(h2, w3, b3))


def actor_forward_ref_f32(x, params, *, max_action=1.0):
    """Full-precision reference (sanity check for the bf16 weight path)."""
    w1, b1, w2, b2, w3, b3 = params
    h1 = jnp.maximum(x @ w1 + b1, 0.0)
    h2 = jnp.maximum(h1 @ w2 + b2, 0.0)
    return max_action * jnp.tanh(h2 @ w3 + b3)


if __name__ == "__main__":
    # QuadrotorEnv: observation dim 13 (pos, vel, quat, body rates),
    # action dim 4 (cmd_motor_speeds), max_action 1.0
    STATE_DIM, ACTION_DIM, MAX_ACTION = 13, 4, 1.0
    BATCH = 2

    key = jax.random.PRNGKey(0)
    kx, kp = jax.random.split(key)
    x = jax.random.normal(kx, (BATCH, STATE_DIM), jnp.float32)
    params = init_actor_params(kp, STATE_DIM, ACTION_DIM)

    prepared, dims = prepare_actor_params(params)
    out = actor_forward(x, prepared, dims, max_action=MAX_ACTION)
    out = jax.block_until_ready(out)

    ref_bf16 = actor_forward_ref_bf16(x, params, max_action=MAX_ACTION)
    ref_f32 = actor_forward_ref_f32(x, params, max_action=MAX_ACTION)

    assert out.shape == (BATCH, ACTION_DIM)
    # same-path check (bf16 operands / folded bf16 biases, f32 accumulation)
    assert jnp.allclose(out, ref_bf16, atol=2e-3, rtol=2e-3)
    # loose check against full-f32 math (bf16 quantization only)
    assert jnp.allclose(out, ref_f32, atol=5e-2, rtol=5e-2)

    print("KERNEL_OK")
</pallas_src>

<mosaic_0001>
module attributes {stable_mosaic.version = 11 : i64} {
  func.func @actor_kernel(%arg0: memref<8x128xbf16, #tpu.memory_space<vmem>>, %arg1: memref<128x512xbf16, #tpu.memory_space<vmem>>, %arg2: memref<512x384xbf16, #tpu.memory_space<vmem>>, %arg3: memref<384x128xbf16, #tpu.memory_space<vmem>>, %arg4: memref<8x128xf32, #tpu.memory_space<vmem>>) attributes {dimension_semantics = [], scalar_prefetch = 0 : i64, scratch_operands = 0 : i64, tpu.core_type = #tpu.core_type<tc>} {
    %c0 = arith.constant 0 : index
    %c0_0 = arith.constant 0 : index
    %0 = vector.load %arg0[%c0, %c0_0] : memref<8x128xbf16, #tpu.memory_space<vmem>>, vector<8x128xbf16>
    %c0_1 = arith.constant 0 : index
    %c0_2 = arith.constant 0 : index
    %1 = vector.load %arg1[%c0_1, %c0_2] : memref<128x512xbf16, #tpu.memory_space<vmem>>, vector<128x512xbf16>
    %cst = arith.constant dense<0.000000e+00> : vector<8x512xf32>
    %2 = tpu.matmul %0, %1, %cst {dimension_numbers = #tpu.dot_dimension_numbers<[1], [0], [0], [1], [0, 0, 1, 1], [], []>} : vector<8x128xbf16>, vector<128x512xbf16>, vector<8x512xf32> -> vector<8x512xf32>
    %cst_3 = arith.constant 0.000000e+00 : f32
    %3 = vector.broadcast %cst_3 : f32 to vector<8x512xf32>
    %4 = arith.maximumf %2, %3 : vector<8x512xf32>
    %5 = arith.truncf %4 : vector<8x512xf32> to vector<8x512xbf16>
    %c0_4 = arith.constant 0 : index
    %c0_5 = arith.constant 0 : index
    %6 = vector.load %arg2[%c0_4, %c0_5] : memref<512x384xbf16, #tpu.memory_space<vmem>>, vector<512x384xbf16>
    %cst_6 = arith.constant dense<0.000000e+00> : vector<8x384xf32>
    %7 = tpu.matmul %5, %6, %cst_6 {dimension_numbers = #tpu.dot_dimension_numbers<[1], [0], [0], [1], [0, 0, 1, 1], [], []>} : vector<8x512xbf16>, vector<512x384xbf16>, vector<8x384xf32> -> vector<8x384xf32>
    %cst_7 = arith.constant 0.000000e+00 : f32
    %8 = vector.broadcast %cst_7 : f32 to vector<8x384xf32>
    %9 = arith.maximumf %7, %8 : vector<8x384xf32>
    %10 = arith.truncf %9 : vector<8x384xf32> to vector<8x384xbf16>
    %c0_8 = arith.constant 0 : index
    %c0_9 = arith.constant 0 : index
    %11 = vector.load %arg3[%c0_8, %c0_9] : memref<384x128xbf16, #tpu.memory_space<vmem>>, vector<384x128xbf16>
    %cst_10 = arith.constant dense<0.000000e+00> : vector<8x128xf32>
    %12 = tpu.matmul %10, %11, %cst_10 {dimension_numbers = #tpu.dot_dimension_numbers<[1], [0], [0], [1], [0, 0, 1, 1], [], []>} : vector<8x384xbf16>, vector<384x128xbf16>, vector<8x128xf32> -> vector<8x128xf32>
    %13 = math.tanh %12 : vector<8x128xf32>
    %cst_11 = arith.constant 1.000000e+00 : f32
    %14 = vector.broadcast %cst_11 : f32 to vector<8x128xf32>
    %15 = arith.mulf %14, %13 : vector<8x128xf32>
    %c0_12 = arith.constant 0 : index
    %c0_13 = arith.constant 0 : index
    %16 = vector.load %arg4[%c0_12, %c0_13] : memref<8x128xf32, #tpu.memory_space<vmem>>, vector<8x128xf32>
    tpu.vector_store %arg4[%c0_12, %c0_13], %15 {strides = array<i32>} : memref<8x128xf32, #tpu.memory_space<vmem>>, vector<8x128xf32>,
    return
  }
}

</mosaic_0001>

<llo_original>
// kernel: tpu_custom_call.1
$region0: #{tpu_custom_call.1}
  #allocation0 [shape = 'u32[]', space=smem, size = 0x4, offset = 0x4, fixed_abs, tag = 'smem constant byte address 0x4 - core index']
  #allocation1 [shape = 'u32[72,128]{1,0:T(1,128)}', space=vmem, size = 0x9000, scoped, tag = 'internal scratch']
  %s0 = inlined_call_operand.hbm [shape: bf16[8,128], index: 0, kind: input, shape index: {}]
  %s1 = inlined_call_operand.hbm [shape: bf16[128,512], index: 1, kind: input, shape index: {}]
  %s2 = inlined_call_operand.hbm [shape: bf16[512,384], index: 2, kind: input, shape index: {}]
  %s3 = inlined_call_operand.hbm [shape: bf16[384,128], index: 3, kind: input, shape index: {}]
  %s4 = inlined_call_operand.hbm [shape: f32[8,128], index: 4, kind: output, shape index: {}]
  %s5 = sld [smem:[#allocation0]]
  $region42: #{tpu_custom_call.1} parent=0
    _
  %s7 = ssub.s32 1, %s5
  %s8 = scalar_select 0, %s7, %s5
  $region1: #{tpu_custom_call.1} parent=0
    #allocation2 [shape = 'u8[2048]{0}', space=vmem, size = 0x800, scoped, tag = 'input window, operand 0, single buffered']
    #allocation3 [shape = 's32[1]{0}', space=sflag, size = 0x4, scoped, tag = 'scoped memory for tpu_custom_call.1']
    #allocation4 [shape = 's32[1]{0}', space=sflag, size = 0x4, scoped, tag = 'scoped memory for tpu_custom_call.1']
    #allocation5 [shape = 'u8[131072]{0}', space=vmem, size = 0x20000, scoped, tag = 'input window, operand 1, single buffered']
    #allocation6 [shape = 's32[1]{0}', space=sflag, size = 0x4, scoped, tag = 'scoped memory for tpu_custom_call.1']
    #allocation7 [shape = 'u8[393216]{0}', space=vmem, size = 0x60000, scoped, tag = 'input window, operand 2, single buffered']
    #allocation8 [shape = 'u8[98304]{0}', space=vmem, size = 0x18000, scoped, tag = 'input window, operand 3, single buffered']
    #allocation9 [shape = 's32[1]{0}', space=sflag, size = 0x4, scoped, tag = 'scoped memory for tpu_custom_call.1']
    #allocation10 [shape = 'u8[4096]{0}', space=vmem, size = 0x1000, scoped, tag = 'output window, operand 0, single buffered']
    %9 = vsyncpa [#allocation3], 0
    %10 = vsyncpa [#allocation6], 0
    %11 = vsyncpa [#allocation9], 0
    %12 = vsyncpa [#allocation4], 0
    // Predicated region
    $region2: #{tpu_custom_call.1} parent=1 // pred_check
      _
    $region3: #{tpu_custom_call.1} parent=1 // pred_check_branch
      %14 = sbr.rel (0) target = $region5
    $region4: #{tpu_custom_call.1} parent=1 // pred_region
      %16 = vsyncadd [#allocation3], 0
      %s18 = sshll.u32 %s0, 4
      %s19 = int_to_ptr.hbm [resolvable:$true] %s18
      %s20 = sshll.u32 [#allocation2], 4
      %s21 = int_to_ptr.vmem [resolvable:$true] %s20
      %23 = dma.hbm_to_vmem [thread:$0]  %s19, 64, %s21, [#allocation3]
    $region5: #{tpu_custom_call.1} parent=1 // pred_fallthru
      _
    // Predicated region
    $region6: #{tpu_custom_call.1} parent=1 // pred_check
      _
    $region7: #{tpu_custom_call.1} parent=1 // pred_check_branch
      %25 = sbr.rel (0) target = $region9
    $region8: #{tpu_custom_call.1} parent=1 // pred_region
      %27 = vsyncadd [#allocation6], 0
      %s28 = sshll.u32 %s1, 4
      %s29 = int_to_ptr.hbm [resolvable:$true] %s28
      %s30 = sshll.u32 [#allocation5], 4
      %s31 = int_to_ptr.vmem [resolvable:$true] %s30
      %36 = dma.hbm_to_vmem [thread:$0]  %s29, 4096, %s31, [#allocation6], 256, 256, 16
    $region9: #{tpu_custom_call.1} parent=1 // pred_fallthru
      _
    // Predicated region
    $region10: #{tpu_custom_call.1} parent=1 // pred_check
      _
    $region11: #{tpu_custom_call.1} parent=1 // pred_check_branch
      %38 = sbr.rel (0) target = $region13
    $region12: #{tpu_custom_call.1} parent=1 // pred_region
      %40 = vsyncadd [#allocation6], 0
      %s41 = sshll.u32 %s2, 4
      %s42 = int_to_ptr.hbm [resolvable:$true] %s41
      %s43 = sshll.u32 [#allocation7], 4
      %s44 = int_to_ptr.vmem [resolvable:$true] %s43
      %49 = dma.hbm_to_vmem [thread:$0]  %s42, 12288, %s44, [#allocation6], 192, 192, 12
    $region13: #{tpu_custom_call.1} parent=1 // pred_fallthru
      _
    // Predicated region
    $region14: #{tpu_custom_call.1} parent=1 // pred_check
      _
    $region15: #{tpu_custom_call.1} parent=1 // pred_check_branch
      %51 = sbr.rel (0) target = $region17
    $region16: #{tpu_custom_call.1} parent=1 // pred_region
      %53 = vsyncadd [#allocation9], 0
      %s54 = sshll.u32 %s3, 4
      %s55 = int_to_ptr.hbm [resolvable:$true] %s54
      %s56 = sshll.u32 [#allocation8], 4
      %s57 = int_to_ptr.vmem [resolvable:$true] %s56
      %62 = dma.hbm_to_vmem [thread:$0]  %s55, 3072, %s57, [#allocation9], 64, 64, 4
    $region17: #{tpu_custom_call.1} parent=1 // pred_fallthru
      _
    // Predicated region
    $region18: #{tpu_custom_call.1} parent=1 // pred_check
      _
    $region19: #{tpu_custom_call.1} parent=1 // pred_check_branch
      %64 = sbr.rel (0) target = $region21
    $region20: #{tpu_custom_call.1} parent=1 // pred_region
      %66 = dma.done [#allocation3], 64
    $region21: #{tpu_custom_call.1} parent=1 // pred_fallthru
      _
    // Predicated region
    $region22: #{tpu_custom_call.1} parent=1 // pred_check
      _
    $region23: #{tpu_custom_call.1} parent=1 // pred_check_branch
      %68 = sbr.rel (0) target = $region25
    $region24: #{tpu_custom_call.1} parent=1 // pred_region
      %70 = dma.done [#allocation6], 4096
    $region25: #{tpu_custom_call.1} parent=1 // pred_fallthru
      _
    // Predicated region
    $region26: #{tpu_custom_call.1} parent=1 // pred_check
      _
    $region27: #{tpu_custom_call.1} parent=1 // pred_check_branch
      %72 = sbr.rel (0) target = $region29
    $region28: #{tpu_custom_call.1} parent=1 // pred_region
      %74 = dma.done [#allocation6], 12288
    $region29: #{tpu_custom_call.1} parent=1 // pred_fallthru
      _
    // Predicated region
    $region30: #{tpu_custom_call.1} parent=1 // pred_check
      _
    $region31: #{tpu_custom_call.1} parent=1 // pred_check_branch
      %76 = sbr.rel (0) target = $region33
    $region32: #{tpu_custom_call.1} parent=1 // pred_region
      %78 = dma.done [#allocation9], 3072
    $region33: #{tpu_custom_call.1} parent=1 // pred_fallthru
      _
    %v79 = vld [vmem:[#allocation2] sm:$0xf]
    %v80 = vld [vmem:[#allocation5] sm:$0xff]
    %v81 = vld [vmem:[#allocation5 + $0x8] sm:$0xff]
    %v82 = vld [vmem:[#allocation5 + $0x10] sm:$0xff]
    %v83 = vld [vmem:[#allocation5 + $0x18] sm:$0xff]
    %v84 = vld [vmem:[#allocation5 + $0x20] sm:$0xff]
    %v85 = vld [vmem:[#allocation5 + $0x28] sm:$0xff]
    %v86 = vld [vmem:[#allocation5 + $0x30] sm:$0xff]
    %v87 = vld [vmem:[#allocation5 + $0x38] sm:$0xff]
    %v88 = vld [vmem:[#allocation5 + $0x40] sm:$0xff]
    %v89 = vld [vmem:[#allocation5 + $0x48] sm:$0xff]
    %v90 = vld [vmem:[#allocation5 + $0x50] sm:$0xff]
    %v91 = vld [vmem:[#allocation5 + $0x58] sm:$0xff]
    %v92 = vld [vmem:[#allocation5 + $0x60] sm:$0xff]
    %v93 = vld [vmem:[#allocation5 + $0x68] sm:$0xff]
    %v94 = vld [vmem:[#allocation5 + $0x70] sm:$0xff]
    %v95 = vld [vmem:[#allocation5 + $0x78] sm:$0xff]
    %v96 = vld [vmem:[#allocation5 + $0x80] sm:$0xff]
    %v97 = vld [vmem:[#allocation5 + $0x88] sm:$0xff]
    %v98 = vld [vmem:[#allocation5 + $0x90] sm:$0xff]
    %v99 = vld [vmem:[#allocation5 + $0x98] sm:$0xff]
    %v100 = vld [vmem:[#allocation5 + $0xa0] sm:$0xff]
    %v101 = vld [vmem:[#allocation5 + $0xa8] sm:$0xff]
    %v102 = vld [vmem:[#allocation5 + $0xb0] sm:$0xff]
    %v103 = vld [vmem:[#allocation5 + $0xb8] sm:$0xff]
    %v104 = vld [vmem:[#allocation5 + $0xc0] sm:$0xff]
    %v105 = vld [vmem:[#allocation5 + $0xc8] sm:$0xff]
    %v106 = vld [vmem:[#allocation5 + $0xd0] sm:$0xff]
    %v107 = vld [vmem:[#allocation5 + $0xd8] sm:$0xff]
    %v108 = vld [vmem:[#allocation5 + $0xe0] sm:$0xff]
    %v109 = vld [vmem:[#allocation5 + $0xe8] sm:$0xff]
    %v110 = vld [vmem:[#allocation5 + $0xf0] sm:$0xff]
    %v111 = vld [vmem:[#allocation5 + $0xf8] sm:$0xff]
    %v144 = vunpack.c.l.b16 %v80
    %v145 = vunpack.c.h.b16 %v80
    %v146 = vunpack.c.l.b16 %v81
    %v147 = vunpack.c.h.b16 %v81
    %v148 = vunpack.c.l.b16 %v82
    %v149 = vunpack.c.h.b16 %v82
    %v150 = vunpack.c.l.b16 %v83
    %v151 = vunpack.c.h.b16 %v83
    %v152 = vunpack.c.l.b16 %v84
    %v153 = vunpack.c.h.b16 %v84
    %v154 = vunpack.c.l.b16 %v85
    %v155 = vunpack.c.h.b16 %v85
    %v156 = vunpack.c.l.b16 %v86
    %v157 = vunpack.c.h.b16 %v86
    %v158 = vunpack.c.l.b16 %v87
    %v159 = vunpack.c.h.b16 %v87
    %v160 = vunpack.c.l.b16 %v88
    %v161 = vunpack.c.h.b16 %v88
    %v162 = vunpack.c.l.b16 %v89
    %v163 = vunpack.c.h.b16 %v89
    %v164 = vunpack.c.l.b16 %v90
    %v165 = vunpack.c.h.b16 %v90
    %v166 = vunpack.c.l.b16 %v91
    %v167 = vunpack.c.h.b16 %v91
    %v168 = vunpack.c.l.b16 %v92
    %v169 = vunpack.c.h.b16 %v92
    %v170 = vunpack.c.l.b16 %v93
    %v171 = vunpack.c.h.b16 %v93
    %v172 = vunpack.c.l.b16 %v94
    %v173 = vunpack.c.h.b16 %v94
    %v174 = vunpack.c.l.b16 %v95
    %v175 = vunpack.c.h.b16 %v95
    %v176 = vunpack.c.l.b16 %v96
    %v177 = vunpack.c.h.b16 %v96
    %v178 = vunpack.c.l.b16 %v97
    %v179 = vunpack.c.h.b16 %v97
    %v180 = vunpack.c.l.b16 %v98
    %v181 = vunpack.c.h.b16 %v98
    %v182 = vunpack.c.l.b16 %v99
    %v183 = vunpack.c.h.b16 %v99
    %v184 = vunpack.c.l.b16 %v100
    %v185 = vunpack.c.h.b16 %v100
    %v186 = vunpack.c.l.b16 %v101
    %v187 = vunpack.c.h.b16 %v101
    %v188 = vunpack.c.l.b16 %v102
    %v189 = vunpack.c.h.b16 %v102
    %v190 = vunpack.c.l.b16 %v103
    %v191 = vunpack.c.h.b16 %v103
    %v192 = vunpack.c.l.b16 %v104
    %v193 = vunpack.c.h.b16 %v104
    %v194 = vunpack.c.l.b16 %v105
    %v195 = vunpack.c.h.b16 %v105
    %v196 = vunpack.c.l.b16 %v106
    %v197 = vunpack.c.h.b16 %v106
    %v198 = vunpack.c.l.b16 %v107
    %v199 = vunpack.c.h.b16 %v107
    %v200 = vunpack.c.l.b16 %v108
    %v201 = vunpack.c.h.b16 %v108
    %v202 = vunpack.c.l.b16 %v109
    %v203 = vunpack.c.h.b16 %v109
    %v204 = vunpack.c.l.b16 %v110
    %v205 = vunpack.c.h.b16 %v110
    %v206 = vunpack.c.l.b16 %v111
    %v207 = vunpack.c.h.b16 %v111
    %v208 = vpack.c.b16 %v148, %v144
    %v209 = vpack.c.b16 %v149, %v145
    %v210 = vpack.c.b16 %v150, %v146
    %v211 = vpack.c.b16 %v151, %v147
    %v212 = vpack.c.b16 %v156, %v152
    %v213 = vpack.c.b16 %v157, %v153
    %v214 = vpack.c.b16 %v158, %v154
    %v215 = vpack.c.b16 %v159, %v155
    %v216 = vpack.c.b16 %v164, %v160
    %v217 = vpack.c.b16 %v165, %v161
    %v218 = vpack.c.b16 %v166, %v162
    %v219 = vpack.c.b16 %v167, %v163
    %v220 = vpack.c.b16 %v172, %v168
    %v221 = vpack.c.b16 %v173, %v169
    %v222 = vpack.c.b16 %v174, %v170
    %v223 = vpack.c.b16 %v175, %v171
    %v224 = vpack.c.b16 %v180, %v176
    %v225 = vpack.c.b16 %v181, %v177
    %v226 = vpack.c.b16 %v182, %v178
    %v227 = vpack.c.b16 %v183, %v179
    %v228 = vpack.c.b16 %v188, %v184
    %v229 = vpack.c.b16 %v189, %v185
    %v230 = vpack.c.b16 %v190, %v186
    %v231 = vpack.c.b16 %v191, %v187
    %v232 = vpack.c.b16 %v196, %v192
    %v233 = vpack.c.b16 %v197, %v193
    %v234 = vpack.c.b16 %v198, %v194
    %v235 = vpack.c.b16 %v199, %v195
    %v236 = vpack.c.b16 %v204, %v200
    %v237 = vpack.c.b16 %v205, %v201
    %v238 = vpack.c.b16 %v206, %v202
    %v239 = vpack.c.b16 %v207, %v203
    %272 = vmatpush.bf16.msra.mxu0 %v236
    %273 = vmatpush.bf16.msra.mxu0 %v232
    %274 = vmatpush.bf16.msra.mxu0 %v228
    %275 = vmatpush.bf16.msra.mxu0 %v224
    %276 = vmatpush.bf16.msra.mxu0 %v220
    %277 = vmatpush.bf16.msra.mxu0 %v216
    %278 = vmatpush.bf16.msra.mxu0 %v212
    %279 = vmatpush.bf16.msra.mxu0 %v208
    %280 = vmatmul.bf16.gmra.mxu0 %v79
    %v281 = vpop.f32.mrf.mxu0
    %v282 = vadd.f32 0.0, %v281
    %v283 = vpop.f32.mrf.mxu0
    %284 = vdwg.mxu0
    %285 = vmatpush.bf16.msra.mxu0 %v237
    %286 = vmatpush.bf16.msra.mxu0 %v233
    %287 = vmatpush.bf16.msra.mxu0 %v229
    %288 = vmatpush.bf16.msra.mxu0 %v225
    %289 = vmatpush.bf16.msra.mxu0 %v221
    %290 = vmatpush.bf16.msra.mxu0 %v217
    %291 = vmatpush.bf16.msra.mxu0 %v213
    %292 = vmatpush.bf16.msra.mxu0 %v209
    %293 = vmatmul.bf16.gmra.mxu0 %v79
    %v294 = vpop.f32.mrf.mxu0
    %v295 = vadd.f32 0.0, %v294
    %v296 = vpop.f32.mrf.mxu0
    %297 = vdwg.mxu0
    %298 = vmatpush.bf16.msra.mxu0 %v238
    %299 = vmatpush.bf16.msra.mxu0 %v234
    %300 = vmatpush.bf16.msra.mxu0 %v230
    %301 = vmatpush.bf16.msra.mxu0 %v226
    %302 = vmatpush.bf16.msra.mxu0 %v222
    %303 = vmatpush.bf16.msra.mxu0 %v218
    %304 = vmatpush.bf16.msra.mxu0 %v214
    %305 = vmatpush.bf16.msra.mxu0 %v210
    %306 = vmatmul.bf16.gmra.mxu0 %v79
    %v307 = vpop.f32.mrf.mxu0
    %v308 = vadd.f32 0.0, %v307
    %v309 = vpop.f32.mrf.mxu0
    %310 = vdwg.mxu0
    %311 = vmatpush.bf16.msra.mxu0 %v239
    %312 = vmatpush.bf16.msra.mxu0 %v235
    %313 = vmatpush.bf16.msra.mxu0 %v231
    %314 = vmatpush.bf16.msra.mxu0 %v227
    %315 = vmatpush.bf16.msra.mxu0 %v223
    %316 = vmatpush.bf16.msra.mxu0 %v219
    %317 = vmatpush.bf16.msra.mxu0 %v215
    %318 = vmatpush.bf16.msra.mxu0 %v211
    %319 = vmatmul.bf16.gmra.mxu0 %v79
    %v320 = vpop.f32.mrf.mxu0
    %v321 = vadd.f32 0.0, %v320
    %v322 = vpop.f32.mrf.mxu0
    %323 = vdwg.mxu0
    %v324 = vmax.f32 %v282, 0.0
    %v325 = vmax.f32 %v295, 0.0
    %v326 = vmax.f32 %v308, 0.0
    %v327 = vmax.f32 %v321, 0.0
    %v328 = vpack.c.bf16 %v324, %v324
    %v329 = vpack.c.bf16 %v325, %v325
    %v330 = vpack.c.bf16 %v326, %v326
    %v331 = vpack.c.bf16 %v327, %v327
    %v332 = vld [vmem:[#allocation7] sm:$0xff]
    %v333 = vld [vmem:[#allocation7 + $0x8] sm:$0xf]
    %v334 = vld [vmem:[#allocation7 + $0xc] sm:$0xff]
    %v335 = vld [vmem:[#allocation7 + $0x14] sm:$0xf]
    %v336 = vld [vmem:[#allocation7 + $0x18] sm:$0xff]
    %v337 = vld [vmem:[#allocation7 + $0x20] sm:$0xf]
    %v338 = vld [vmem:[#allocation7 + $0x24] sm:$0xff]
    %v339 = vld [vmem:[#allocation7 + $0x2c] sm:$0xf]
    %v340 = vld [vmem:[#allocation7 + $0x30] sm:$0xff]
    %v341 = vld [vmem:[#allocation7 + $0x38] sm:$0xf]
    %v342 = vld [vmem:[#allocation7 + $0x3c] sm:$0xff]
    %v343 = vld [vmem:[#allocation7 + $0x44] sm:$0xf]
    %v344 = vld [vmem:[#allocation7 + $0x48] sm:$0xff]
    %v345 = vld [vmem:[#allocation7 + $0x50] sm:$0xf]
    %v346 = vld [vmem:[#allocation7 + $0x54] sm:$0xff]
    %v347 = vld [vmem:[#allocation7 + $0x5c] sm:$0xf]
    %v348 = vld [vmem:[#allocation7 + $0x60] sm:$0xff]
    %v349 = vld [vmem:[#allocation7 + $0x68] sm:$0xf]
    %v350 = vld [vmem:[#allocation7 + $0x6c] sm:$0xff]
    %v351 = vld [vmem:[#allocation7 + $0x74] sm:$0xf]
    %v352 = vld [vmem:[#allocation7 + $0x78] sm:$0xff]
    %v353 = vld [vmem:[#allocation7 + $0x80] sm:$0xf]
    %v354 = vld [vmem:[#allocation7 + $0x84] sm:$0xff]
    %v355 = vld [vmem:[#allocation7 + $0x8c] sm:$0xf]
    %v356 = vld [vmem:[#allocation7 + $0x90] sm:$0xff]
    %v357 = vld [vmem:[#allocation7 + $0x98] sm:$0xf]
    %v358 = vld [vmem:[#allocation7 + $0x9c] sm:$0xff]
    %v359 = vld [vmem:[#allocation7 + $0xa4] sm:$0xf]
    %v360 = vld [vmem:[#allocation7 + $0xa8] sm:$0xff]
    %v361 = vld [vmem:[#allocation7 + $0xb0] sm:$0xf]
    %v362 = vld [vmem:[#allocation7 + $0xb4] sm:$0xff]
    %v363 = vld [vmem:[#allocation7 + $0xbc] sm:$0xf]
    %v364 = vld [vmem:[#allocation7 + $0xc0] sm:$0xff]
    %v365 = vld [vmem:[#allocation7 + $0xc8] sm:$0xf]
    %v366 = vld [vmem:[#allocation7 + $0xcc] sm:$0xff]
    %v367 = vld [vmem:[#allocation7 + $0xd4] sm:$0xf]
    %v368 = vld [vmem:[#allocation7 + $0xd8] sm:$0xff]
    %v369 = vld [vmem:[#allocation7 + $0xe0] sm:$0xf]
    %v370 = vld [vmem:[#allocation7 + $0xe4] sm:$0xff]
    %v371 = vld [vmem:[#allocation7 + $0xec] sm:$0xf]
    %v372 = vld [vmem:[#allocation7 + $0xf0] sm:$0xff]
    %v373 = vld [vmem:[#allocation7 + $0xf8] sm:$0xf]
    %v374 = vld [vmem:[#allocation7 + $0xfc] sm:$0xff]
    %v375 = vld [vmem:[#allocation7 + $0x104] sm:$0xf]
    %v376 = vld [vmem:[#allocation7 + $0x108] sm:$0xff]
    %v377 = vld [vmem:[#allocation7 + $0x110] sm:$0xf]
    %v378 = vld [vmem:[#allocation7 + $0x114] sm:$0xff]
    %v379 = vld [vmem:[#allocation7 + $0x11c] sm:$0xf]
    %v380 = vld [vmem:[#allocation7 + $0x120] sm:$0xff]
    %v381 = vld [vmem:[#allocation7 + $0x128] sm:$0xf]
    %v382 = vld [vmem:[#allocation7 + $0x12c] sm:$0xff]
    %v383 = vld [vmem:[#allocation7 + $0x134] sm:$0xf]
    %v384 = vld [vmem:[#allocation7 + $0x138] sm:$0xff]
    %v385 = vld [vmem:[#allocation7 + $0x140] sm:$0xf]
    %v386 = vld [vmem:[#allocation7 + $0x144] sm:$0xff]
    %v387 = vld [vmem:[#allocation7 + $0x14c] sm:$0xf]
    %v388 = vld [vmem:[#allocation7 + $0x150] sm:$0xff]
    %v389 = vld [vmem:[#allocation7 + $0x158] sm:$0xf]
    %v390 = vld [vmem:[#allocation7 + $0x15c] sm:$0xff]
    %v391 = vld [vmem:[#allocation7 + $0x164] sm:$0xf]
    %v392 = vld [vmem:[#allocation7 + $0x168] sm:$0xff]
    %v393 = vld [vmem:[#allocation7 + $0x170] sm:$0xf]
    %v394 = vld [vmem:[#allocation7 + $0x174] sm:$0xff]
    %v395 = vld [vmem:[#allocation7 + $0x17c] sm:$0xf]
    %v396 = vld [vmem:[#allocation7 + $0x180] sm:$0xff]
    %v397 = vld [vmem:[#allocation7 + $0x188] sm:$0xf]
    %v398 = vld [vmem:[#allocation7 + $0x18c] sm:$0xff]
    %v399 = vld [vmem:[#allocation7 + $0x194] sm:$0xf]
    %v400 = vld [vmem:[#allocation7 + $0x198] sm:$0xff]
    %v401 = vld [vmem:[#allocation7 + $0x1a0] sm:$0xf]
    %v402 = vld [vmem:[#allocation7 + $0x1a4] sm:$0xff]
    %v403 = vld [vmem:[#allocation7 + $0x1ac] sm:$0xf]
    %v404 = vld [vmem:[#allocation7 + $0x1b0] sm:$0xff]
    %v405 = vld [vmem:[#allocation7 + $0x1b8] sm:$0xf]
    %v406 = vld [vmem:[#allocation7 + $0x1bc] sm:$0xff]
    %v407 = vld [vmem:[#allocation7 + $0x1c4] sm:$0xf]
    %v408 = vld [vmem:[#allocation7 + $0x1c8] sm:$0xff]
    %v409 = vld [vmem:[#allocation7 + $0x1d0] sm:$0xf]
    %v410 = vld [vmem:[#allocation7 + $0x1d4] sm:$0xff]
    %v411 = vld [vmem:[#allocation7 + $0x1dc] sm:$0xf]
    %v412 = vld [vmem:[#allocation7 + $0x1e0] sm:$0xff]
    %v413 = vld [vmem:[#allocation7 + $0x1e8] sm:$0xf]
    %v414 = vld [vmem:[#allocation7 + $0x1ec] sm:$0xff]
    %v415 = vld [vmem:[#allocation7 + $0x1f4] sm:$0xf]
    %v416 = vld [vmem:[#allocation7 + $0x1f8] sm:$0xff]
    %v417 = vld [vmem:[#allocation7 + $0x200] sm:$0xf]
    %v418 = vld [vmem:[#allocation7 + $0x204] sm:$0xff]
    %v419 = vld [vmem:[#allocation7 + $0x20c] sm:$0xf]
    %v420 = vld [vmem:[#allocation7 + $0x210] sm:$0xff]
    %v421 = vld [vmem:[#allocation7 + $0x218] sm:$0xf]
    %v422 = vld [vmem:[#allocation7 + $0x21c] sm:$0xff]
    %v423 = vld [vmem:[#allocation7 + $0x224] sm:$0xf]
    %v424 = vld [vmem:[#allocation7 + $0x228] sm:$0xff]
    %v425 = vld [vmem:[#allocation7 + $0x230] sm:$0xf]
    %v426 = vld [vmem:[#allocation7 + $0x234] sm:$0xff]
    %v427 = vld [vmem:[#allocation7 + $0x23c] sm:$0xf]
    %v428 = vld [vmem:[#allocation7 + $0x240] sm:$0xff]
    %v429 = vld [vmem:[#allocation7 + $0x248] sm:$0xf]
    %v430 = vld [vmem:[#allocation7 + $0x24c] sm:$0xff]
    %v431 = vld [vmem:[#allocation7 + $0x254] sm:$0xf]
    %v432 = vld [vmem:[#allocation7 + $0x258] sm:$0xff]
    %v433 = vld [vmem:[#allocation7 + $0x260] sm:$0xf]
    %v434 = vld [vmem:[#allocation7 + $0x264] sm:$0xff]
    %v435 = vld [vmem:[#allocation7 + $0x26c] sm:$0xf]
    %v436 = vld [vmem:[#allocation7 + $0x270] sm:$0xff]
    %v437 = vld [vmem:[#allocation7 + $0x278] sm:$0xf]
    %v438 = vld [vmem:[#allocation7 + $0x27c] sm:$0xff]
    %v439 = vld [vmem:[#allocation7 + $0x284] sm:$0xf]
    %v440 = vld [vmem:[#allocation7 + $0x288] sm:$0xff]
    %v441 = vld [vmem:[#allocation7 + $0x290] sm:$0xf]
    %v442 = vld [vmem:[#allocation7 + $0x294] sm:$0xff]
    %v443 = vld [vmem:[#allocation7 + $0x29c] sm:$0xf]
    %v444 = vld [vmem:[#allocation7 + $0x2a0] sm:$0xff]
    %v445 = vld [vmem:[#allocation7 + $0x2a8] sm:$0xf]
    %v446 = vld [vmem:[#allocation7 + $0x2ac] sm:$0xff]
    %v447 = vld [vmem:[#allocation7 + $0x2b4] sm:$0xf]
    %v448 = vld [vmem:[#allocation7 + $0x2b8] sm:$0xff]
    %v449 = vld [vmem:[#allocation7 + $0x2c0] sm:$0xf]
    %v450 = vld [vmem:[#allocation7 + $0x2c4] sm:$0xff]
    %v451 = vld [vmem:[#allocation7 + $0x2cc] sm:$0xf]
    %v452 = vld [vmem:[#allocation7 + $0x2d0] sm:$0xff]
    %v453 = vld [vmem:[#allocation7 + $0x2d8] sm:$0xf]
    %v454 = vld [vmem:[#allocation7 + $0x2dc] sm:$0xff]
    %v455 = vld [vmem:[#allocation7 + $0x2e4] sm:$0xf]
    %v456 = vld [vmem:[#allocation7 + $0x2e8] sm:$0xff]
    %v457 = vld [vmem:[#allocation7 + $0x2f0] sm:$0xf]
    %v458 = vld [vmem:[#allocation7 + $0x2f4] sm:$0xff]
    %v459 = vld [vmem:[#allocation7 + $0x2fc] sm:$0xf]
    %v588 = vunpack.c.l.b16 %v332
    %v589 = vunpack.c.h.b16 %v332
    %v590 = vunpack.c.l.b16 %v333
    %v591 = vunpack.c.l.b16 %v334
    %v592 = vunpack.c.h.b16 %v334
    %v593 = vunpack.c.l.b16 %v335
    %v594 = vunpack.c.l.b16 %v336
    %v595 = vunpack.c.h.b16 %v336
    %v596 = vunpack.c.l.b16 %v337
    %v597 = vunpack.c.l.b16 %v338
    %v598 = vunpack.c.h.b16 %v338
    %v599 = vunpack.c.l.b16 %v339
    %v600 = vunpack.c.l.b16 %v340
    %v601 = vunpack.c.h.b16 %v340
    %v602 = vunpack.c.l.b16 %v341
    %v603 = vunpack.c.l.b16 %v342
    %v604 = vunpack.c.h.b16 %v342
    %v605 = vunpack.c.l.b16 %v343
    %v606 = vunpack.c.l.b16 %v344
    %v607 = vunpack.c.h.b16 %v344
    %v608 = vunpack.c.l.b16 %v345
    %v609 = vunpack.c.l.b16 %v346
    %v610 = vunpack.c.h.b16 %v346
    %v611 = vunpack.c.l.b16 %v347
    %v612 = vunpack.c.l.b16 %v348
    %v613 = vunpack.c.h.b16 %v348
    %v614 = vunpack.c.l.b16 %v349
    %v615 = vunpack.c.l.b16 %v350
    %v616 = vunpack.c.h.b16 %v350
    %v617 = vunpack.c.l.b16 %v351
    %v618 = vunpack.c.l.b16 %v352
    %v619 = vunpack.c.h.b16 %v352
    %v620 = vunpack.c.l.b16 %v353
    %v621 = vunpack.c.l.b16 %v354
    %v622 = vunpack.c.h.b16 %v354
    %v623 = vunpack.c.l.b16 %v355
    %v624 = vunpack.c.l.b16 %v356
    %v625 = vunpack.c.h.b16 %v356
    %v626 = vunpack.c.l.b16 %v357
    %v627 = vunpack.c.l.b16 %v358
    %v628 = vunpack.c.h.b16 %v358
    %v629 = vunpack.c.l.b16 %v359
    %v630 = vunpack.c.l.b16 %v360
    %v631 = vunpack.c.h.b16 %v360
    %v632 = vunpack.c.l.b16 %v361
    %v633 = vunpack.c.l.b16 %v362
    %v634 = vunpack.c.h.b16 %v362
    %v635 = vunpack.c.l.b16 %v363
    %v636 = vunpack.c.l.b16 %v364
    %v637 = vunpack.c.h.b16 %v364
    %v638 = vunpack.c.l.b16 %v365
    %v639 = vunpack.c.l.b16 %v366
    %v640 = vunpack.c.h.b16 %v366
    %v641 = vunpack.c.l.b16 %v367
    %v642 = vunpack.c.l.b16 %v368
    %v643 = vunpack.c.h.b16 %v368
    %v644 = vunpack.c.l.b16 %v369
    %v645 = vunpack.c.l.b16 %v370
    %v646 = vunpack.c.h.b16 %v370
    %v647 = vunpack.c.l.b16 %v371
    %v648 = vunpack.c.l.b16 %v372
    %v649 = vunpack.c.h.b16 %v372
    %v650 = vunpack.c.l.b16 %v373
    %v651 = vunpack.c.l.b16 %v374
    %v652 = vunpack.c.h.b16 %v374
    %v653 = vunpack.c.l.b16 %v375
    %v654 = vunpack.c.l.b16 %v376
    %v655 = vunpack.c.h.b16 %v376
    %v656 = vunpack.c.l.b16 %v377
    %v657 = vunpack.c.l.b16 %v378
    %v658 = vunpack.c.h.b16 %v378
    %v659 = vunpack.c.l.b16 %v379
    %v660 = vunpack.c.l.b16 %v380
    %v661 = vunpack.c.h.b16 %v380
    %v662 = vunpack.c.l.b16 %v381
    %v663 = vunpack.c.l.b16 %v382
    %v664 = vunpack.c.h.b16 %v382
    %v665 = vunpack.c.l.b16 %v383
    %v666 = vunpack.c.l.b16 %v384
    %v667 = vunpack.c.h.b16 %v384
    %v668 = vunpack.c.l.b16 %v385
    %v669 = vunpack.c.l.b16 %v386
    %v670 = vunpack.c.h.b16 %v386
    %v671 = vunpack.c.l.b16 %v387
    %v672 = vunpack.c.l.b16 %v388
    %v673 = vunpack.c.h.b16 %v388
    %v674 = vunpack.c.l.b16 %v389
    %v675 = vunpack.c.l.b16 %v390
    %v676 = vunpack.c.h.b16 %v390
    %v677 = vunpack.c.l.b16 %v391
    %v678 = vunpack.c.l.b16 %v392
    %v679 = vunpack.c.h.b16 %v392
    %v680 = vunpack.c.l.b16 %v393
    %v681 = vunpack.c.l.b16 %v394
    %v682 = vunpack.c.h.b16 %v394
    %v683 = vunpack.c.l.b16 %v395
    %v684 = vunpack.c.l.b16 %v396
    %v685 = vunpack.c.h.b16 %v396
    %v686 = vunpack.c.l.b16 %v397
    %v687 = vunpack.c.l.b16 %v398
    %v688 = vunpack.c.h.b16 %v398
    %v689 = vunpack.c.l.b16 %v399
    %v690 = vunpack.c.l.b16 %v400
    %v691 = vunpack.c.h.b16 %v400
    %v692 = vunpack.c.l.b16 %v401
    %v693 = vunpack.c.l.b16 %v402
    %v694 = vunpack.c.h.b16 %v402
    %v695 = vunpack.c.l.b16 %v403
    %v696 = vunpack.c.l.b16 %v404
    %v697 = vunpack.c.h.b16 %v404
    %v698 = vunpack.c.l.b16 %v405
    %v699 = vunpack.c.l.b16 %v406
    %v700 = vunpack.c.h.b16 %v406
    %v701 = vunpack.c.l.b16 %v407
    %v702 = vunpack.c.l.b16 %v408
    %v703 = vunpack.c.h.b16 %v408
    %v704 = vunpack.c.l.b16 %v409
    %v705 = vunpack.c.l.b16 %v410
    %v706 = vunpack.c.h.b16 %v410
    %v707 = vunpack.c.l.b16 %v411
    %v708 = vunpack.c.l.b16 %v412
    %v709 = vunpack.c.h.b16 %v412
    %v710 = vunpack.c.l.b16 %v413
    %v711 = vunpack.c.l.b16 %v414
    %v712 = vunpack.c.h.b16 %v414
    %v713 = vunpack.c.l.b16 %v415
    %v714 = vunpack.c.l.b16 %v416
    %v715 = vunpack.c.h.b16 %v416
    %v716 = vunpack.c.l.b16 %v417
    %v717 = vunpack.c.l.b16 %v418
    %v718 = vunpack.c.h.b16 %v418
    %v719 = vunpack.c.l.b16 %v419
    %v720 = vunpack.c.l.b16 %v420
    %v721 = vunpack.c.h.b16 %v420
    %v722 = vunpack.c.l.b16 %v421
    %v723 = vunpack.c.l.b16 %v422
    %v724 = vunpack.c.h.b16 %v422
    %v725 = vunpack.c.l.b16 %v423
    %v726 = vunpack.c.l.b16 %v424
    %v727 = vunpack.c.h.b16 %v424
    %v728 = vunpack.c.l.b16 %v425
    %v729 = vunpack.c.l.b16 %v426
    %v730 = vunpack.c.h.b16 %v426
    %v731 = vunpack.c.l.b16 %v427
    %v732 = vunpack.c.l.b16 %v428
    %v733 = vunpack.c.h.b16 %v428
    %v734 = vunpack.c.l.b16 %v429
    %v735 = vunpack.c.l.b16 %v430
    %v736 = vunpack.c.h.b16 %v430
    %v737 = vunpack.c.l.b16 %v431
    %v738 = vunpack.c.l.b16 %v432
    %v739 = vunpack.c.h.b16 %v432
    %v740 = vunpack.c.l.b16 %v433
    %v741 = vunpack.c.l.b16 %v434
    %v742 = vunpack.c.h.b16 %v434
    %v743 = vunpack.c.l.b16 %v435
    %v744 = vunpack.c.l.b16 %v436
    %v745 = vunpack.c.h.b16 %v436
    %v746 = vunpack.c.l.b16 %v437
    %v747 = vunpack.c.l.b16 %v438
    %v748 = vunpack.c.h.b16 %v438
    %v749 = vunpack.c.l.b16 %v439
    %v750 = vunpack.c.l.b16 %v440
    %v751 = vunpack.c.h.b16 %v440
    %v752 = vunpack.c.l.b16 %v441
    %v753 = vunpack.c.l.b16 %v442
    %v754 = vunpack.c.h.b16 %v442
    %v755 = vunpack.c.l.b16 %v443
    %v756 = vunpack.c.l.b16 %v444
    %v757 = vunpack.c.h.b16 %v444
    %v758 = vunpack.c.l.b16 %v445
    %v759 = vunpack.c.l.b16 %v446
    %v760 = vunpack.c.h.b16 %v446
    %v761 = vunpack.c.l.b16 %v447
    %v762 = vunpack.c.l.b16 %v448
    %v763 = vunpack.c.h.b16 %v448
    %v764 = vunpack.c.l.b16 %v449
    %v765 = vunpack.c.l.b16 %v450
    %v766 = vunpack.c.h.b16 %v450
    %v767 = vunpack.c.l.b16 %v451
    %v768 = vunpack.c.l.b16 %v452
    %v769 = vunpack.c.h.b16 %v452
    %v770 = vunpack.c.l.b16 %v453
    %v771 = vunpack.c.l.b16 %v454
    %v772 = vunpack.c.h.b16 %v454
    %v773 = vunpack.c.l.b16 %v455
    %v774 = vunpack.c.l.b16 %v456
    %v775 = vunpack.c.h.b16 %v456
    %v776 = vunpack.c.l.b16 %v457
    %v777 = vunpack.c.l.b16 %v458
    %v778 = vunpack.c.h.b16 %v458
    %v779 = vunpack.c.l.b16 %v459
    %v780 = vpack.c.b16 %v591, %v588
    %v781 = vpack.c.b16 %v592, %v589
    %v782 = vpack.c.b16 %v593, %v590
    %v783 = vpack.c.b16 %v597, %v594
    %v784 = vpack.c.b16 %v598, %v595
    %v785 = vpack.c.b16 %v599, %v596
    %v786 = vpack.c.b16 %v603, %v600
    %v787 = vpack.c.b16 %v604, %v601
    %v788 = vpack.c.b16 %v605, %v602
    %v789 = vpack.c.b16 %v609, %v606
    %v790 = vpack.c.b16 %v610, %v607
    %v791 = vpack.c.b16 %v611, %v608
    %v792 = vpack.c.b16 %v615, %v612
    %v793 = vpack.c.b16 %v616, %v613
    %v794 = vpack.c.b16 %v617, %v614
    %v795 = vpack.c.b16 %v621, %v618
    %v796 = vpack.c.b16 %v622, %v619
    %v797 = vpack.c.b16 %v623, %v620
    %v798 = vpack.c.b16 %v627, %v624
    %v799 = vpack.c.b16 %v628, %v625
    %v800 = vpack.c.b16 %v629, %v626
    %v801 = vpack.c.b16 %v633, %v630
    %v802 = vpack.c.b16 %v634, %v631
    %v803 = vpack.c.b16 %v635, %v632
    %v804 = vpack.c.b16 %v639, %v636
    %v805 = vpack.c.b16 %v640, %v637
    %v806 = vpack.c.b16 %v641, %v638
    %v807 = vpack.c.b16 %v645, %v642
    %v808 = vpack.c.b16 %v646, %v643
    %v809 = vpack.c.b16 %v647, %v644
    %v810 = vpack.c.b16 %v651, %v648
    %v811 = vpack.c.b16 %v652, %v649
    %v812 = vpack.c.b16 %v653, %v650
    %v813 = vpack.c.b16 %v657, %v654
    %v814 = vpack.c.b16 %v658, %v655
    %v815 = vpack.c.b16 %v659, %v656
    %v816 = vpack.c.b16 %v663, %v660
    %v817 = vpack.c.b16 %v664, %v661
    %v818 = vpack.c.b16 %v665, %v662
    %v819 = vpack.c.b16 %v669, %v666
    %v820 = vpack.c.b16 %v670, %v667
    %v821 = vpack.c.b16 %v671, %v668
    %v822 = vpack.c.b16 %v675, %v672
    %v823 = vpack.c.b16 %v676, %v673
    %v824 = vpack.c.b16 %v677, %v674
    %v825 = vpack.c.b16 %v681, %v678
    %v826 = vpack.c.b16 %v682, %v679
    %v827 = vpack.c.b16 %v683, %v680
    %v828 = vpack.c.b16 %v687, %v684
    %v829 = vpack.c.b16 %v688, %v685
    %v830 = vpack.c.b16 %v689, %v686
    %v831 = vpack.c.b16 %v693, %v690
    %v832 = vpack.c.b16 %v694, %v691
    %v833 = vpack.c.b16 %v695, %v692
    %v834 = vpack.c.b16 %v699, %v696
    %v835 = vpack.c.b16 %v700, %v697
    %v836 = vpack.c.b16 %v701, %v698
    %v837 = vpack.c.b16 %v705, %v702
    %v838 = vpack.c.b16 %v706, %v703
    %v839 = vpack.c.b16 %v707, %v704
    %v840 = vpack.c.b16 %v711, %v708
    %v841 = vpack.c.b16 %v712, %v709
    %v842 = vpack.c.b16 %v713, %v710
    %v843 = vpack.c.b16 %v717, %v714
    %v844 = vpack.c.b16 %v718, %v715
    %v845 = vpack.c.b16 %v719, %v716
    %v846 = vpack.c.b16 %v723, %v720
    %v847 = vpack.c.b16 %v724, %v721
    %v848 = vpack.c.b16 %v725, %v722
    %v849 = vpack.c.b16 %v729, %v726
    %v850 = vpack.c.b16 %v730, %v727
    %v851 = vpack.c.b16 %v731, %v728
    %v852 = vpack.c.b16 %v735, %v732
    %v853 = vpack.c.b16 %v736, %v733
    %v854 = vpack.c.b16 %v737, %v734
    %v855 = vpack.c.b16 %v741, %v738
    %v856 = vpack.c.b16 %v742, %v739
    %v857 = vpack.c.b16 %v743, %v740
    %v858 = vpack.c.b16 %v747, %v744
    %v859 = vpack.c.b16 %v748, %v745
    %v860 = vpack.c.b16 %v749, %v746
    %v861 = vpack.c.b16 %v753, %v750
    %v862 = vpack.c.b16 %v754, %v751
    %v863 = vpack.c.b16 %v755, %v752
    %v864 = vpack.c.b16 %v759, %v756
    %v865 = vpack.c.b16 %v760, %v757
    %v866 = vpack.c.b16 %v761, %v758
    %v867 = vpack.c.b16 %v765, %v762
    %v868 = vpack.c.b16 %v766, %v763
    %v869 = vpack.c.b16 %v767, %v764
    %v870 = vpack.c.b16 %v771, %v768
    %v871 = vpack.c.b16 %v772, %v769
    %v872 = vpack.c.b16 %v773, %v770
    %v873 = vpack.c.b16 %v777, %v774
    %v874 = vpack.c.b16 %v778, %v775
    %v875 = vpack.c.b16 %v779, %v776
    %972 = vmatpush.bf16.msra.mxu0 %v801
    %973 = vmatpush.bf16.msra.mxu0 %v798
    %974 = vmatpush.bf16.msra.mxu0 %v795
    %975 = vmatpush.bf16.msra.mxu0 %v792
    %976 = vmatpush.bf16.msra.mxu0 %v789
    %977 = vmatpush.bf16.msra.mxu0 %v786
    %978 = vmatpush.bf16.msra.mxu0 %v783
    %979 = vmatpush.bf16.msra.mxu0 %v780
    %980 = vmatmul.bf16.gmra.mxu0 %v328
    %v981 = vpop.f32.mrf.mxu0
    %v982 = vadd.f32 0.0, %v981
    %v983 = vpop.f32.mrf.mxu0
    %984 = vdwg.mxu0
    %985 = vmatpush.bf16.msra.mxu0 %v825
    %986 = vmatpush.bf16.msra.mxu0 %v822
    %987 = vmatpush.bf16.msra.mxu0 %v819
    %988 = vmatpush.bf16.msra.mxu0 %v816
    %989 = vmatpush.bf16.msra.mxu0 %v813
    %990 = vmatpush.bf16.msra.mxu0 %v810
    %991 = vmatpush.bf16.msra.mxu0 %v807
    %992 = vmatpush.bf16.msra.mxu0 %v804
    %993 = vmatmul.bf16.gmra.mxu0 %v329
    %v994 = vpop.f32.mrf.mxu0
    %v995 = vadd.f32 %v982, %v994
    %v996 = vpop.f32.mrf.mxu0
    %997 = vdwg.mxu0
    %998 = vmatpush.bf16.msra.mxu0 %v849
    %999 = vmatpush.bf16.msra.mxu0 %v846
    %1000 = vmatpush.bf16.msra.mxu0 %v843
    %1001 = vmatpush.bf16.msra.mxu0 %v840
    %1002 = vmatpush.bf16.msra.mxu0 %v837
    %1003 = vmatpush.bf16.msra.mxu0 %v834
    %1004 = vmatpush.bf16.msra.mxu0 %v831
    %1005 = vmatpush.bf16.msra.mxu0 %v828
    %1006 = vmatmul.bf16.gmra.mxu0 %v330
    %v1007 = vpop.f32.mrf.mxu0
    %v1008 = vadd.f32 %v995, %v1007
    %v1009 = vpop.f32.mrf.mxu0
    %1010 = vdwg.mxu0
    %1011 = vmatpush.bf16.msra.mxu0 %v873
    %1012 = vmatpush.bf16.msra.mxu0 %v870
    %1013 = vmatpush.bf16.msra.mxu0 %v867
    %1014 = vmatpush.bf16.msra.mxu0 %v864
    %1015 = vmatpush.bf16.msra.mxu0 %v861
    %1016 = vmatpush.bf16.msra.mxu0 %v858
    %1017 = vmatpush.bf16.msra.mxu0 %v855
    %1018 = vmatpush.bf16.msra.mxu0 %v852
    %1019 = vmatmul.bf16.gmra.mxu0 %v331
    %v1020 = vpop.f32.mrf.mxu0
    %v1021 = vadd.f32 %v1008, %v1020
    %v1022 = vpop.f32.mrf.mxu0
    %1023 = vdwg.mxu0
    %1024 = vmatpush.bf16.msra.mxu0 %v802
    %1025 = vmatpush.bf16.msra.mxu0 %v799
    %1026 = vmatpush.bf16.msra.mxu0 %v796
    %1027 = vmatpush.bf16.msra.mxu0 %v793
    %1028 = vmatpush.bf16.msra.mxu0 %v790
    %1029 = vmatpush.bf16.msra.mxu0 %v787
    %1030 = vmatpush.bf16.msra.mxu0 %v784
    %1031 = vmatpush.bf16.msra.mxu0 %v781
    %1032 = vmatmul.bf16.gmra.mxu0 %v328
    %v1033 = vpop.f32.mrf.mxu0
    %v1034 = vadd.f32 0.0, %v1033
    %v1035 = vpop.f32.mrf.mxu0
    %1036 = vdwg.mxu0
    %1037 = vmatpush.bf16.msra.mxu0 %v826
    %1038 = vmatpush.bf16.msra.mxu0 %v823
    %1039 = vmatpush.bf16.msra.mxu0 %v820
    %1040 = vmatpush.bf16.msra.mxu0 %v817
    %1041 = vmatpush.bf16.msra.mxu0 %v814
    %1042 = vmatpush.bf16.msra.mxu0 %v811
    %1043 = vmatpush.bf16.msra.mxu0 %v808
    %1044 = vmatpush.bf16.msra.mxu0 %v805
    %1045 = vmatmul.bf16.gmra.mxu0 %v329
    %v1046 = vpop.f32.mrf.mxu0
    %v1047 = vadd.f32 %v1034, %v1046
    %v1048 = vpop.f32.mrf.mxu0
    %1049 = vdwg.mxu0
    %1050 = vmatpush.bf16.msra.mxu0 %v850
    %1051 = vmatpush.bf16.msra.mxu0 %v847
    %1052 = vmatpush.bf16.msra.mxu0 %v844
    %1053 = vmatpush.bf16.msra.mxu0 %v841
    %1054 = vmatpush.bf16.msra.mxu0 %v838
    %1055 = vmatpush.bf16.msra.mxu0 %v835
    %1056 = vmatpush.bf16.msra.mxu0 %v832
    %1057 = vmatpush.bf16.msra.mxu0 %v829
    %1058 = vmatmul.bf16.gmra.mxu0 %v330
    %v1059 = vpop.f32.mrf.mxu0
    %v1060 = vadd.f32 %v1047, %v1059
    %v1061 = vpop.f32.mrf.mxu0
    %1062 = vdwg.mxu0
    %1063 = vmatpush.bf16.msra.mxu0 %v874
    %1064 = vmatpush.bf16.msra.mxu0 %v871
    %1065 = vmatpush.bf16.msra.mxu0 %v868
    %1066 = vmatpush.bf16.msra.mxu0 %v865
    %1067 = vmatpush.bf16.msra.mxu0 %v862
    %1068 = vmatpush.bf16.msra.mxu0 %v859
    %1069 = vmatpush.bf16.msra.mxu0 %v856
    %1070 = vmatpush.bf16.msra.mxu0 %v853
    %1071 = vmatmul.bf16.gmra.mxu0 %v331
    %v1072 = vpop.f32.mrf.mxu0
    %v1073 = vadd.f32 %v1060, %v1072
    %v1074 = vpop.f32.mrf.mxu0
    %1075 = vdwg.mxu0
    %1076 = vmatpush.bf16.msra.mxu0 %v803
    %1077 = vmatpush.bf16.msra.mxu0 %v800
    %1078 = vmatpush.bf16.msra.mxu0 %v797
    %1079 = vmatpush.bf16.msra.mxu0 %v794
    %1080 = vmatpush.bf16.msra.mxu0 %v791
    %1081 = vmatpush.bf16.msra.mxu0 %v788
    %1082 = vmatpush.bf16.msra.mxu0 %v785
    %1083 = vmatpush.bf16.msra.mxu0 %v782
    %1084 = vmatmul.bf16.gmra.mxu0 %v328
    %v1085 = vpop.f32.mrf.mxu0
    %v1086 = vadd.f32 0.0, %v1085
    %v1087 = vpop.f32.mrf.mxu0
    %1088 = vdwg.mxu0
    %1089 = vmatpush.bf16.msra.mxu0 %v827
    %1090 = vmatpush.bf16.msra.mxu0 %v824
    %1091 = vmatpush.bf16.msra.mxu0 %v821
    %1092 = vmatpush.bf16.msra.mxu0 %v818
    %1093 = vmatpush.bf16.msra.mxu0 %v815
    %1094 = vmatpush.bf16.msra.mxu0 %v812
    %1095 = vmatpush.bf16.msra.mxu0 %v809
    %1096 = vmatpush.bf16.msra.mxu0 %v806
    %1097 = vmatmul.bf16.gmra.mxu0 %v329
    %v1098 = vpop.f32.mrf.mxu0
    %v1099 = vadd.f32 %v1086, %v1098
    %v1100 = vpop.f32.mrf.mxu0
    %1101 = vdwg.mxu0
    %1102 = vmatpush.bf16.msra.mxu0 %v851
    %1103 = vmatpush.bf16.msra.mxu0 %v848
    %1104 = vmatpush.bf16.msra.mxu0 %v845
    %1105 = vmatpush.bf16.msra.mxu0 %v842
    %1106 = vmatpush.bf16.msra.mxu0 %v839
    %1107 = vmatpush.bf16.msra.mxu0 %v836
    %1108 = vmatpush.bf16.msra.mxu0 %v833
    %1109 = vmatpush.bf16.msra.mxu0 %v830
    %1110 = vmatmul.bf16.gmra.mxu0 %v330
    %v1111 = vpop.f32.mrf.mxu0
    %v1112 = vadd.f32 %v1099, %v1111
    %v1113 = vpop.f32.mrf.mxu0
    %1114 = vdwg.mxu0
    %1115 = vmatpush.bf16.msra.mxu0 %v875
    %1116 = vmatpush.bf16.msra.mxu0 %v872
    %1117 = vmatpush.bf16.msra.mxu0 %v869
    %1118 = vmatpush.bf16.msra.mxu0 %v866
    %1119 = vmatpush.bf16.msra.mxu0 %v863
    %1120 = vmatpush.bf16.msra.mxu0 %v860
    %1121 = vmatpush.bf16.msra.mxu0 %v857
    %1122 = vmatpush.bf16.msra.mxu0 %v854
    %1123 = vmatmul.bf16.gmra.mxu0 %v331
    %v1124 = vpop.f32.mrf.mxu0
    %v1125 = vadd.f32 %v1112, %v1124
    %v1126 = vpop.f32.mrf.mxu0
    %1127 = vdwg.mxu0
    %v1128 = vmax.f32 %v1021, 0.0
    %v1129 = vmax.f32 %v1073, 0.0
    %v1130 = vmax.f32 %v1125, 0.0
    %v1131 = vpack.c.bf16 %v1128, %v1128
    %v1132 = vpack.c.bf16 %v1129, %v1129
    %v1133 = vpack.c.bf16 %v1130, %v1130
    %v1134 = vld [vmem:[#allocation8] sm:$0xf]
    %v1135 = vld [vmem:[#allocation8 + $0x4] sm:$0xf]
    %v1136 = vld [vmem:[#allocation8 + $0x8] sm:$0xf]
    %v1137 = vld [vmem:[#allocation8 + $0xc] sm:$0xf]
    %v1138 = vld [vmem:[#allocation8 + $0x10] sm:$0xf]
    %v1139 = vld [vmem:[#allocation8 + $0x14] sm:$0xf]
    %v1140 = vld [vmem:[#allocation8 + $0x18] sm:$0xf]
    %v1141 = vld [vmem:[#allocation8 + $0x1c] sm:$0xf]
    %v1142 = vld [vmem:[#allocation8 + $0x20] sm:$0xf]
    %v1143 = vld [vmem:[#allocation8 + $0x24] sm:$0xf]
    %v1144 = vld [vmem:[#allocation8 + $0x28] sm:$0xf]
    %v1145 = vld [vmem:[#allocation8 + $0x2c] sm:$0xf]
    %v1146 = vld [vmem:[#allocation8 + $0x30] sm:$0xf]
    %v1147 = vld [vmem:[#allocation8 + $0x34] sm:$0xf]
    %v1148 = vld [vmem:[#allocation8 + $0x38] sm:$0xf]
    %v1149 = vld [vmem:[#allocation8 + $0x3c] sm:$0xf]
    %v1150 = vld [vmem:[#allocation8 + $0x40] sm:$0xf]
    %v1151 = vld [vmem:[#allocation8 + $0x44] sm:$0xf]
    %v1152 = vld [vmem:[#allocation8 + $0x48] sm:$0xf]
    %v1153 = vld [vmem:[#allocation8 + $0x4c] sm:$0xf]
    %v1154 = vld [vmem:[#allocation8 + $0x50] sm:$0xf]
    %v1155 = vld [vmem:[#allocation8 + $0x54] sm:$0xf]
    %v1156 = vld [vmem:[#allocation8 + $0x58] sm:$0xf]
    %v1157 = vld [vmem:[#allocation8 + $0x5c] sm:$0xf]
    %v1158 = vld [vmem:[#allocation8 + $0x60] sm:$0xf]
    %v1159 = vld [vmem:[#allocation8 + $0x64] sm:$0xf]
    %v1160 = vld [vmem:[#allocation8 + $0x68] sm:$0xf]
    %v1161 = vld [vmem:[#allocation8 + $0x6c] sm:$0xf]
    %v1162 = vld [vmem:[#allocation8 + $0x70] sm:$0xf]
    %v1163 = vld [vmem:[#allocation8 + $0x74] sm:$0xf]
    %v1164 = vld [vmem:[#allocation8 + $0x78] sm:$0xf]
    %v1165 = vld [vmem:[#allocation8 + $0x7c] sm:$0xf]
    %v1166 = vld [vmem:[#allocation8 + $0x80] sm:$0xf]
    %v1167 = vld [vmem:[#allocation8 + $0x84] sm:$0xf]
    %v1168 = vld [vmem:[#allocation8 + $0x88] sm:$0xf]
    %v1169 = vld [vmem:[#allocation8 + $0x8c] sm:$0xf]
    %v1170 = vld [vmem:[#allocation8 + $0x90] sm:$0xf]
    %v1171 = vld [vmem:[#allocation8 + $0x94] sm:$0xf]
    %v1172 = vld [vmem:[#allocation8 + $0x98] sm:$0xf]
    %v1173 = vld [vmem:[#allocation8 + $0x9c] sm:$0xf]
    %v1174 = vld [vmem:[#allocation8 + $0xa0] sm:$0xf]
    %v1175 = vld [vmem:[#allocation8 + $0xa4] sm:$0xf]
    %v1176 = vld [vmem:[#allocation8 + $0xa8] sm:$0xf]
    %v1177 = vld [vmem:[#allocation8 + $0xac] sm:$0xf]
    %v1178 = vld [vmem:[#allocation8 + $0xb0] sm:$0xf]
    %v1179 = vld [vmem:[#allocation8 + $0xb4] sm:$0xf]
    %v1180 = vld [vmem:[#allocation8 + $0xb8] sm:$0xf]
    %v1181 = vld [vmem:[#allocation8 + $0xbc] sm:$0xf]
    %v1230 = vunpack.c.l.b16 %v1134
    %v1231 = vunpack.c.l.b16 %v1135
    %v1232 = vunpack.c.l.b16 %v1136
    %v1233 = vunpack.c.l.b16 %v1137
    %v1234 = vunpack.c.l.b16 %v1138
    %v1235 = vunpack.c.l.b16 %v1139
    %v1236 = vunpack.c.l.b16 %v1140
    %v1237 = vunpack.c.l.b16 %v1141
    %v1238 = vunpack.c.l.b16 %v1142
    %v1239 = vunpack.c.l.b16 %v1143
    %v1240 = vunpack.c.l.b16 %v1144
    %v1241 = vunpack.c.l.b16 %v1145
    %v1242 = vunpack.c.l.b16 %v1146
    %v1243 = vunpack.c.l.b16 %v1147
    %v1244 = vunpack.c.l.b16 %v1148
    %v1245 = vunpack.c.l.b16 %v1149
    %v1246 = vunpack.c.l.b16 %v1150
    %v1247 = vunpack.c.l.b16 %v1151
    %v1248 = vunpack.c.l.b16 %v1152
    %v1249 = vunpack.c.l.b16 %v1153
    %v1250 = vunpack.c.l.b16 %v1154
    %v1251 = vunpack.c.l.b16 %v1155
    %v1252 = vunpack.c.l.b16 %v1156
    %v1253 = vunpack.c.l.b16 %v1157
    %v1254 = vunpack.c.l.b16 %v1158
    %v1255 = vunpack.c.l.b16 %v1159
    %v1256 = vunpack.c.l.b16 %v1160
    %v1257 = vunpack.c.l.b16 %v1161
    %v1258 = vunpack.c.l.b16 %v1162
    %v1259 = vunpack.c.l.b16 %v1163
    %v1260 = vunpack.c.l.b16 %v1164
    %v1261 = vunpack.c.l.b16 %v1165
    %v1262 = vunpack.c.l.b16 %v1166
    %v1263 = vunpack.c.l.b16 %v1167
    %v1264 = vunpack.c.l.b16 %v1168
    %v1265 = vunpack.c.l.b16 %v1169
    %v1266 = vunpack.c.l.b16 %v1170
    %v1267 = vunpack.c.l.b16 %v1171
    %v1268 = vunpack.c.l.b16 %v1172
    %v1269 = vunpack.c.l.b16 %v1173
    %v1270 = vunpack.c.l.b16 %v1174
    %v1271 = vunpack.c.l.b16 %v1175
    %v1272 = vunpack.c.l.b16 %v1176
    %v1273 = vunpack.c.l.b16 %v1177
    %v1274 = vunpack.c.l.b16 %v1178
    %v1275 = vunpack.c.l.b16 %v1179
    %v1276 = vunpack.c.l.b16 %v1180
    %v1277 = vunpack.c.l.b16 %v1181
    %v1278 = vpack.c.b16 %v1231, %v1230
    %v1279 = vpack.c.b16 %v1233, %v1232
    %v1280 = vpack.c.b16 %v1235, %v1234
    %v1281 = vpack.c.b16 %v1237, %v1236
    %v1282 = vpack.c.b16 %v1239, %v1238
    %v1283 = vpack.c.b16 %v1241, %v1240
    %v1284 = vpack.c.b16 %v1243, %v1242
    %v1285 = vpack.c.b16 %v1245, %v1244
    %v1286 = vpack.c.b16 %v1247, %v1246
    %v1287 = vpack.c.b16 %v1249, %v1248
    %v1288 = vpack.c.b16 %v1251, %v1250
    %v1289 = vpack.c.b16 %v1253, %v1252
    %v1290 = vpack.c.b16 %v1255, %v1254
    %v1291 = vpack.c.b16 %v1257, %v1256
    %v1292 = vpack.c.b16 %v1259, %v1258
    %v1293 = vpack.c.b16 %v1261, %v1260
    %v1294 = vpack.c.b16 %v1263, %v1262
    %v1295 = vpack.c.b16 %v1265, %v1264
    %v1296 = vpack.c.b16 %v1267, %v1266
    %v1297 = vpack.c.b16 %v1269, %v1268
    %v1298 = vpack.c.b16 %v1271, %v1270
    %v1299 = vpack.c.b16 %v1273, %v1272
    %v1300 = vpack.c.b16 %v1275, %v1274
    %v1301 = vpack.c.b16 %v1277, %v1276
    %1326 = vmatpush.bf16.msra.mxu0 %v1285
    %1327 = vmatpush.bf16.msra.mxu0 %v1284
    %1328 = vmatpush.bf16.msra.mxu0 %v1283
    %1329 = vmatpush.bf16.msra.mxu0 %v1282
    %1330 = vmatpush.bf16.msra.mxu0 %v1281
    %1331 = vmatpush.bf16.msra.mxu0 %v1280
    %1332 = vmatpush.bf16.msra.mxu0 %v1279
    %1333 = vmatpush.bf16.msra.mxu0 %v1278
    %1334 = vmatmul.bf16.gmra.mxu0 %v1131
    %v1335 = vpop.f32.mrf.mxu0
    %v1336 = vadd.f32 0.0, %v1335
    %v1337 = vpop.f32.mrf.mxu0
    %1338 = vdwg.mxu0
    %1339 = vmatpush.bf16.msra.mxu0 %v1293
    %1340 = vmatpush.bf16.msra.mxu0 %v1292
    %1341 = vmatpush.bf16.msra.mxu0 %v1291
    %1342 = vmatpush.bf16.msra.mxu0 %v1290
    %1343 = vmatpush.bf16.msra.mxu0 %v1289
    %1344 = vmatpush.bf16.msra.mxu0 %v1288
    %1345 = vmatpush.bf16.msra.mxu0 %v1287
    %1346 = vmatpush.bf16.msra.mxu0 %v1286
    %1347 = vmatmul.bf16.gmra.mxu0 %v1132
    %v1348 = vpop.f32.mrf.mxu0
    %v1349 = vadd.f32 %v1336, %v1348
    %v1350 = vpop.f32.mrf.mxu0
    %1351 = vdwg.mxu0
    %1352 = vmatpush.bf16.msra.mxu0 %v1301
    %1353 = vmatpush.bf16.msra.mxu0 %v1300
    %1354 = vmatpush.bf16.msra.mxu0 %v1299
    %1355 = vmatpush.bf16.msra.mxu0 %v1298
    %1356 = vmatpush.bf16.msra.mxu0 %v1297
    %1357 = vmatpush.bf16.msra.mxu0 %v1296
    %1358 = vmatpush.bf16.msra.mxu0 %v1295
    %1359 = vmatpush.bf16.msra.mxu0 %v1294
    %1360 = vmatmul.bf16.gmra.mxu0 %v1133
    %v1361 = vpop.f32.mrf.mxu0
    %v1362 = vadd.f32 %v1349, %v1361
    %v1363 = vpop.f32.mrf.mxu0
    %1364 = vdwg.mxu0
    %v1365 = vtanh.pop %v1362
    %1366 = vst [vmem:[#allocation10] sm:$0xff] %v1365
    // Predicated region
    $region34: #{tpu_custom_call.1} parent=1 // pred_check
      _
    $region35: #{tpu_custom_call.1} parent=1 // pred_check_branch
      %1368 = sbr.rel (0) target = $region37
    $region36: #{tpu_custom_call.1} parent=1 // pred_region
      %1370 = vsyncadd [#allocation4], 0
      %s1372 = sshll.u32 [#allocation10], 4
      %s1373 = int_to_ptr.vmem [resolvable:$true] %s1372
      %s1374 = sshll.u32 %s4, 4
      %s1375 = int_to_ptr.hbm [resolvable:$true] %s1374
      %1377 = dma.vmem_to_hbm [thread:$0]  %s1373, 128, %s1375, [#allocation4]
    $region37: #{tpu_custom_call.1} parent=1 // pred_fallthru
      _
    // Predicated region
    $region38: #{tpu_custom_call.1} parent=1 // pred_check
      _
    $region39: #{tpu_custom_call.1} parent=1 // pred_check_branch
      %1379 = sbr.rel (0) target = $region41
    $region40: #{tpu_custom_call.1} parent=1 // pred_region
      %1381 = dma.done [#allocation4], 128
    $region41: #{tpu_custom_call.1} parent=1 // pred_fallthru
      _
    %1382 = vsyncpa [#allocation3], 1
    %1383 = vsyncpa [#allocation6], 1
    %1384 = vsyncpa [#allocation9], 1
    %1385 = vsyncpa [#allocation4], 1

</llo_original>
